<compile_context>
chip_gen: v7x
topology: tpu7x:2x2x1
jax: 0.10.0
libtpu: 0.0.40
codegen_flags: <defaults>
</compile_context>

<pallas_src>
import jax
import jax.numpy as jnp
from jax.experimental import pallas as pl
from jax.experimental.pallas import tpu as pltpu

# --- module spec constants (simplified_deepseek.py) ---
HIDDEN = 128
NUM_HEADS = 8
NUM_EXPERTS = 6
TOP_K = 2
NUM_LAYERS = 2
VOCAB = 100
EPS = 1e-6

BATCH = 4
SEQ = 10


# ----------------------------------------------------------------------------
# Tiling helpers
# ----------------------------------------------------------------------------
def _round_up(x, m):
    return ((x + m - 1) // m) * m


def _vmem_capacity_bytes():
    # Per-TensorCore physical VMEM; fall back to the smallest (v7x = 64 MiB).
    try:
        return int(pltpu.get_tpu_info().vmem_capacity_bytes)
    except Exception:
        return 64 * 1024 * 1024


def _choose_tile_rows(rows, in_cols, out_cols, dtype, reserved_bytes=0):
    """Row-tile size for a [rows, in_cols] -> [rows, out_cols] streaming kernel."""
    itemsize = jnp.dtype(dtype).itemsize
    row_mult = 16 if itemsize < 4 else 8              # bf16 packs 2 rows / sublane
    # Bytes kept live in VMEM per row: double-buffered in+out tiles plus the
    # in-kernel f32 temporaries (x_f32, x*x, normalized copy).
    pipeline_row = (in_cols + out_cols) * itemsize * 2
    temps_row = in_cols * 4 * 3
    budget = max(int(_vmem_capacity_bytes() * 0.55) - reserved_bytes, 1 << 20)
    budget_rows = max(row_mult, budget // max(pipeline_row + temps_row, 1))
    # Per-block byte target (~4 MiB per input buffer) -> HBM roofline plateau.
    target_rows = max(row_mult, (4 << 20) // max(in_cols * itemsize, 1))
    tile = min(target_rows, budget_rows)
    # Guarantee >=2 (prefer 4) row blocks so the "parallel" axis shards across
    # both TensorCores on v7x whenever the input is big enough.
    if rows > row_mult:
        min_blocks = 4 if rows >= 4 * row_mult else 2
        tile = min(tile, _round_up(pl.cdiv(rows, min_blocks), row_mult))
    tile = max(row_mult, (tile // row_mult) * row_mult)
    return min(tile, _round_up(rows, row_mult))


def _compiler_params(grid_rank, footprint_bytes):
    cap = _vmem_capacity_bytes()
    limit = int(min(max(footprint_bytes + (8 << 20), 16 << 20), cap * 3 // 4))
    return pltpu.CompilerParams(
        dimension_semantics=("parallel",) * grid_rank,
        vmem_limit_bytes=limit,
    )


# ----------------------------------------------------------------------------
# Kernel 1: standalone RMSNorm
# ----------------------------------------------------------------------------
def _rmsnorm_kernel(x_ref, g_ref, o_ref):
    # Compute in f32.  The spec module works directly in x.dtype (f32 here),
    # so this is bit-compatible for f32 inputs (ULP-level only for bf16).
    x = x_ref[...].astype(jnp.float32)
    ms = jnp.sum(x * x, axis=-1, keepdims=True) * (1.0 / x_ref.shape[-1])
    # Padded rows of a ragged last block flow through rsqrt on garbage data;
    # the masked output store discards them, so this is benign.
    o_ref[...] = (x * jax.lax.rsqrt(ms + EPS) * g_ref[...]).astype(o_ref.dtype)


def rmsnorm(x, weight, *, tile_rows=None):
    orig_shape = x.shape
    hidden = orig_shape[-1]
    x2d = x.reshape(-1, hidden)
    rows = x2d.shape[0]
    if tile_rows is None:
        tile_rows = _choose_tile_rows(rows, hidden, hidden, x.dtype,
                                      reserved_bytes=hidden * 4 * 2)
    g2d = weight.astype(jnp.float32).reshape(1, hidden)

    itemsize = jnp.dtype(x.dtype).itemsize
    footprint = (tile_rows * hidden * itemsize * 2 * 2      # in+out, 2 buffers
                 + tile_rows * hidden * 4 * 3               # f32 temporaries
                 + hidden * 4 * 2)                          # resident norm weight
    out = pl.pallas_call(
        _rmsnorm_kernel,
        out_shape=jax.ShapeDtypeStruct((rows, hidden), x.dtype),
        grid_spec=pltpu.PrefetchScalarGridSpec(
            num_scalar_prefetch=0,
            grid=(pl.cdiv(rows, tile_rows),),                # ragged last block OK
            in_specs=[
                pl.BlockSpec((tile_rows, hidden), lambda i: (i, 0)),
                pl.BlockSpec((1, hidden), lambda i: (0, 0)),  # resident weight
            ],
            out_specs=pl.BlockSpec((tile_rows, hidden), lambda i: (i, 0)),
        ),
        compiler_params=_compiler_params(1, footprint),
    )(x2d, g2d)
    return out.reshape(orig_shape)


# ----------------------------------------------------------------------------
# Kernel 2: fused RMSNorm + Linear   (out = rmsnorm(x) @ W + b)
# ----------------------------------------------------------------------------
def _fused_rmsnorm_matmul_kernel(x_ref, g_ref, w_ref, b_ref, o_ref):
    x = x_ref[...].astype(jnp.float32)
    ms = jnp.sum(x * x, axis=-1, keepdims=True) * (1.0 / x_ref.shape[-1])
    normed = (x * jax.lax.rsqrt(ms + EPS) * g_ref[...]).astype(w_ref.dtype)
    acc = jnp.dot(normed, w_ref[...], preferred_element_type=jnp.float32)
    o_ref[...] = (acc + b_ref[...]).astype(o_ref.dtype)


def fused_rmsnorm_matmul(x, norm_weight, w, b, *, tile_rows=None):
    """out = rmsnorm(x, norm_weight) @ w + b,  w: [hidden, n], b: [n]."""
    orig_shape = x.shape
    hidden = orig_shape[-1]
    n = w.shape[1]
    x2d = x.reshape(-1, hidden)
    rows = x2d.shape[0]

    wf = w.astype(jnp.float32)
    bf = b.astype(jnp.float32).reshape(1, n)
    g2d = norm_weight.astype(jnp.float32).reshape(1, hidden)

    # TODO(synk): tile the output (n) axis for production-size projections;
    # here n <= 3*hidden so the projection weight stays resident in VMEM.
    reserved = (hidden * n + n + hidden) * 4 * 2             # resident W, b, g
    if tile_rows is None:
        tile_rows = _choose_tile_rows(rows, hidden, n, x.dtype,
                                      reserved_bytes=reserved)

    itemsize = jnp.dtype(x.dtype).itemsize
    footprint = (tile_rows * (hidden + n) * itemsize * 2     # in+out, 2 buffers
                 + tile_rows * hidden * 4 * 3                # f32 temporaries
                 + tile_rows * n * 4                         # f32 accumulator
                 + reserved)
    out = pl.pallas_call(
        _fused_rmsnorm_matmul_kernel,
        out_shape=jax.ShapeDtypeStruct((rows, n), x.dtype),
        grid_spec=pltpu.PrefetchScalarGridSpec(
            num_scalar_prefetch=0,
            grid=(pl.cdiv(rows, tile_rows),),
            in_specs=[
                pl.BlockSpec((tile_rows, hidden), lambda i: (i, 0)),
                pl.BlockSpec((1, hidden), lambda i: (0, 0)),
                pl.BlockSpec((hidden, n), lambda i: (0, 0)),  # resident weight
                pl.BlockSpec((1, n), lambda i: (0, 0)),       # resident bias
            ],
            out_specs=pl.BlockSpec((tile_rows, n), lambda i: (i, 0)),
        ),
        compiler_params=_compiler_params(1, footprint),
    )(x2d, g2d, wf, bf)
    return out.reshape(orig_shape[:-1] + (n,))


# ----------------------------------------------------------------------------
# Shared model pieces (plain JAX: RoPE, attention core, MoE combine)
# ----------------------------------------------------------------------------
def rmsnorm_ref(x, w):
    ms = jnp.mean(x * x, axis=-1, keepdims=True)
    return x * jax.lax.rsqrt(ms + EPS) * w


def rope_tables(seq_len, dim):
    inv_freq = 1.0 / (10000.0 ** (jnp.arange(0, dim, 2, dtype=jnp.float32) / dim))
    t = jnp.arange(seq_len, dtype=jnp.float32)
    freqs = jnp.einsum("i,j->ij", t, inv_freq)
    emb = jnp.concatenate([freqs, freqs], axis=-1)
    return jnp.cos(emb), jnp.sin(emb)


def apply_rope(x, cos, sin):
    x1, x2 = x[..., 0::2], x[..., 1::2]
    cos = cos[..., : x1.shape[-1]]
    sin = sin[..., : x1.shape[-1]]
    return jnp.concatenate([x1 * cos - x2 * sin, x1 * sin + x2 * cos], axis=-1)


def attention_core(q_lin, k_lin, v_lin, batch, seq):
    # TODO(synk): RoPE + softmax + PV left to XLA (seq=10, head_dim=16).
    hd = HIDDEN // NUM_HEADS

    def heads(t):
        return t.reshape(batch, seq, NUM_HEADS, hd).transpose(0, 2, 1, 3)

    q, k, v = heads(q_lin), heads(k_lin), heads(v_lin)
    cos, sin = rope_tables(seq, hd)
    cos, sin = cos[None, None], sin[None, None]
    q = apply_rope(q, cos, sin) * (hd ** -0.5)
    k = apply_rope(k, cos, sin)
    w = jax.nn.softmax(jnp.einsum("bhqd,bhkd->bhqk", q, k), axis=-1)
    o = jnp.einsum("bhqk,bhkd->bhqd", w, v)
    return o.transpose(0, 2, 1, 3).reshape(batch, seq, HIDDEN)


def moe_core(normed, p):
    # TODO(synk): dense all-expert matmul + weighted combine stands in for the
    # per-token top-k dispatch; a grouped Pallas MoE matmul is the next kernel.
    gates = jax.nn.softmax(normed @ p["w_gate"] + p["b_gate"], axis=-1)
    topv, topi = jax.lax.top_k(gates, TOP_K)
    onehot = jax.nn.one_hot(topi, NUM_EXPERTS, dtype=normed.dtype)
    comb = jnp.einsum("bsk,bske->bse", topv, onehot)
    eo = jnp.einsum("bsh,eho->bseo", normed, p["w_exp"]) + p["b_exp"]
    return jnp.einsum("bse,bseo->bso", comb, eo)


# ----------------------------------------------------------------------------
# Forward passes: Pallas path and pure-JAX reference path
# ----------------------------------------------------------------------------
def transformer_block_pallas(x, p):
    batch, seq, _ = x.shape
    qkv = fused_rmsnorm_matmul(x, p["norm1_w"], p["w_qkv"], p["b_qkv"])
    q, k, v = jnp.split(qkv, 3, axis=-1)
    attn = attention_core(q, k, v, batch, seq)
    x = x + attn @ p["w_out"] + p["b_out"]
    normed2 = rmsnorm(x, p["norm2_w"])
    return x + moe_core(normed2, p)


def transformer_block_ref(x, p):
    batch, seq, _ = x.shape
    n1 = rmsnorm_ref(x, p["norm1_w"])
    qkv = n1 @ p["w_qkv"] + p["b_qkv"]
    q, k, v = jnp.split(qkv, 3, axis=-1)
    attn = attention_core(q, k, v, batch, seq)
    x = x + attn @ p["w_out"] + p["b_out"]
    n2 = rmsnorm_ref(x, p["norm2_w"])
    return x + moe_core(n2, p)


def deepseek_forward_pallas(params, tokens):
    x = params["embed"][tokens]          # TODO(synk): embedding gather in XLA
    for p in params["layers"]:
        x = transformer_block_pallas(x, p)
    return fused_rmsnorm_matmul(x, params["final_norm_w"],
                                params["w_lm"], params["b_lm"])


def deepseek_forward_ref(params, tokens):
    x = params["embed"][tokens]
    for p in params["layers"]:
        x = transformer_block_ref(x, p)
    normed = rmsnorm_ref(x, params["final_norm_w"])
    return normed @ params["w_lm"] + params["b_lm"]


# ----------------------------------------------------------------------------
# Parameter init
# ----------------------------------------------------------------------------
def _linear(key, fan_in, fan_out):
    kw, kb = jax.random.split(key)
    bound = 1.0 / (fan_in ** 0.5)
    w = jax.random.uniform(kw, (fan_in, fan_out), jnp.float32, -bound, bound)
    b = jax.random.uniform(kb, (fan_out,), jnp.float32, -bound, bound)
    return w, b


def init_params(key):
    keys = jax.random.split(key, 2 + NUM_LAYERS)
    params = {"embed": jax.random.normal(keys[0], (VOCAB, HIDDEN), jnp.float32)}
    layers = []
    for l in range(NUM_LAYERS):
        lk = jax.random.split(keys[2 + l], 8)
        wq, bq = _linear(lk[0], HIDDEN, HIDDEN)
        wk, bk = _linear(lk[1], HIDDEN, HIDDEN)
        wv, bv = _linear(lk[2], HIDDEN, HIDDEN)
        wo, bo = _linear(lk[3], HIDDEN, HIDDEN)
        wg, bg = _linear(lk[4], HIDDEN, NUM_EXPERTS)
        ek = jax.random.split(lk[5], NUM_EXPERTS)
        ew, eb = zip(*[_linear(ek[e], HIDDEN, HIDDEN) for e in range(NUM_EXPERTS)])
        layers.append(dict(
            norm1_w=jnp.ones((HIDDEN,), jnp.float32),
            norm2_w=jnp.ones((HIDDEN,), jnp.float32),
            w_qkv=jnp.concatenate([wq, wk, wv], axis=1),
            b_qkv=jnp.concatenate([bq, bk, bv]),
            w_out=wo, b_out=bo,
            w_gate=wg, b_gate=bg,
            w_exp=jnp.stack(ew), b_exp=jnp.stack(eb)))
    params["layers"] = layers
    params["final_norm_w"] = jnp.ones((HIDDEN,), jnp.float32)
    params["w_lm"], params["b_lm"] = _linear(keys[1], HIDDEN, VOCAB)
    return params


# ----------------------------------------------------------------------------
if __name__ == "__main__":
    # Make the XLA reference matmuls full-f32 so the parity check against the
    # Pallas MXU f32 path is tight.
    jax.config.update("jax_default_matmul_precision", "highest")

    key = jax.random.PRNGKey(0)
    pkey, tkey = jax.random.split(key)
    params = init_params(pkey)
    tokens = jax.random.randint(tkey, (BATCH, SEQ), 0, VOCAB)

    # --- unit checks on the two kernels (exercises the ragged last block) ---
    xs = jax.random.normal(jax.random.PRNGKey(1), (BATCH, SEQ, HIDDEN), jnp.float32)
    g = jnp.ones((HIDDEN,), jnp.float32)
    out_norm = jax.block_until_ready(rmsnorm(xs, g))
    assert jnp.allclose(out_norm, rmsnorm_ref(xs, g), atol=1e-5, rtol=1e-5), \
        "rmsnorm kernel mismatch"

    p0 = params["layers"][0]
    fused = jax.block_until_ready(
        fused_rmsnorm_matmul(xs, p0["norm1_w"], p0["w_qkv"], p0["b_qkv"]))
    ref_fused = rmsnorm_ref(xs, p0["norm1_w"]) @ p0["w_qkv"] + p0["b_qkv"]
    assert jnp.allclose(fused, ref_fused, atol=1e-4, rtol=1e-4), \
        "fused rmsnorm+matmul kernel mismatch"

    # --- full forward: Pallas path vs pure-JAX reference ---
    out = jax.block_until_ready(deepseek_forward_pallas(params, tokens))
    ref = jax.block_until_ready(deepseek_forward_ref(params, tokens))
    assert out.shape == (BATCH, SEQ, VOCAB)
    assert bool(jnp.all(jnp.isfinite(out)))
    max_diff = float(jnp.max(jnp.abs(out - ref)))
    assert jnp.allclose(out, ref, atol=1e-3, rtol=1e-3), f"max diff {max_diff}"

    print("KERNEL_OK")
</pallas_src>

<mosaic_0001>
module attributes {stable_mosaic.version = 11 : i64} {
  func.func @_rmsnorm_kernel(%arg0: i32, %arg1: memref<16x128xf32, #tpu.memory_space<vmem>>, %arg2: memref<1x128xf32, #tpu.memory_space<vmem>>, %arg3: memref<16x128xf32, #tpu.memory_space<vmem>>) attributes {dimension_semantics = [#tpu.dimension_semantics<parallel>], iteration_bounds = array<i64: 3>, scalar_prefetch = 0 : i64, scratch_operands = 0 : i64, tpu.core_type = #tpu.core_type<tc>, window_params = [{transform_indices = @transform_0, window_bounds = array<i64: 16, 128>}, {pipeline_mode = #tpu.pipeline_mode<synchronous>, transform_indices = @transform_1, window_bounds = array<i64: 1, 128>}, {transform_indices = @transform_2, window_bounds = array<i64: 16, 128>}]} {
    %c0 = arith.constant 0 : index
    %c0_0 = arith.constant 0 : index
    %0 = vector.load %arg1[%c0, %c0_0] : memref<16x128xf32, #tpu.memory_space<vmem>>, vector<16x128xf32>
    %1 = arith.mulf %0, %0 : vector<16x128xf32>
    %cst = arith.constant dense<0.000000e+00> : vector<16xf32>
    %2 = vector.multi_reduction <add>, %1, %cst [1] : vector<16x128xf32> to vector<16xf32>
    %3 = vector.shape_cast %2 : vector<16xf32> to vector<16x1xf32>
    %cst_1 = arith.constant 7.812500e-03 : f32
    %4 = vector.broadcast %cst_1 : f32 to vector<16x1xf32>
    %5 = arith.mulf %3, %4 : vector<16x1xf32>
    %cst_2 = arith.constant 9.99999997E-7 : f32
    %6 = vector.broadcast %cst_2 : f32 to vector<16x1xf32>
    %7 = arith.addf %5, %6 : vector<16x1xf32>
    %8 = math.rsqrt %7 : vector<16x1xf32>
    %9 = vector.broadcast %8 : vector<16x1xf32> to vector<16x128xf32>
    %10 = arith.mulf %0, %9 : vector<16x128xf32>
    %c0_3 = arith.constant 0 : index
    %c0_4 = arith.constant 0 : index
    %11 = vector.load %arg2[%c0_3, %c0_4] : memref<1x128xf32, #tpu.memory_space<vmem>>, vector<1x128xf32>
    %12 = vector.broadcast %11 : vector<1x128xf32> to vector<16x128xf32>
    %13 = arith.mulf %10, %12 : vector<16x128xf32>
    %c0_5 = arith.constant 0 : index
    %c0_6 = arith.constant 0 : index
    %14 = vector.load %arg3[%c0_5, %c0_6] : memref<16x128xf32, #tpu.memory_space<vmem>>, vector<16x128xf32>
    tpu.vector_store %arg3[%c0_5, %c0_6], %13 {strides = array<i32>} : memref<16x128xf32, #tpu.memory_space<vmem>>, vector<16x128xf32>,
    return
  }
  func.func @transform_0(%arg0: i32) -> (i32, i32) {
    %c0_i32 = arith.constant 0 : i32
    %c0_i32_0 = arith.constant 0 : i32
    return %arg0, %c0_i32 : i32, i32
  }
  func.func @transform_1(%arg0: i32) -> (i32, i32) {
    %c0_i32 = arith.constant 0 : i32
    %c0_i32_0 = arith.constant 0 : i32
    %c0_i32_1 = arith.constant 0 : i32
    return %c0_i32, %c0_i32_0 : i32, i32
  }
  func.func @transform_2(%arg0: i32) -> (i32, i32) {
    %c0_i32 = arith.constant 0 : i32
    %c0_i32_0 = arith.constant 0 : i32
    return %arg0, %c0_i32 : i32, i32
  }
}

</mosaic_0001>

<llo_original>
// kernel: tpu_custom_call.1
$region0: #{tpu_custom_call.1}
  #allocation0 [shape = 'u32[]', space=smem, size = 0x4, offset = 0x4, fixed_abs, tag = 'smem constant byte address 0x4 - core index']
  #allocation1 [shape = 'u32[144,128]{1,0:T(1,128)}', space=vmem, size = 0x12000, scoped, tag = 'internal scratch']
  %s0 = inlined_call_operand.hbm [shape: f32[40,128], index: 0, kind: input, shape index: {}]
  %s1 = inlined_call_operand.vmem [shape: f32[1,128], index: 1, kind: input, shape index: {}]
  %s2 = inlined_call_operand.hbm [shape: f32[40,128], index: 2, kind: output, shape index: {}]
  %s3 = sld [smem:[#allocation0]]
  $region45: #{tpu_custom_call.1} parent=0
    _
  %s5 = ssub.s32 1, %s3
  %s6 = scalar_select 0, %s5, %s3
  $region1: #{tpu_custom_call.1} parent=0
    #allocation2 [shape = 'u8[16384]{0}', space=vmem, size = 0x4000, scoped, tag = 'input window, operand 0']
    #allocation3 [shape = 's32[2]{0}', space=sflag, size = 0x8, scoped, tag = 'scoped memory for tpu_custom_call.1']
    #allocation4 [shape = 's32[2]{0}', space=sflag, size = 0x8, scoped, tag = 'scoped memory for tpu_custom_call.1']
    #allocation5 [shape = 'u8[16384]{0}', space=vmem, size = 0x4000, scoped, tag = 'output window, operand 0']
    %7 = vsyncpa [#allocation3], 0
    %s8 = scalar_lea.sflag [#allocation3], 1
    %9 = vsyncpa %s8, 0
    %10 = vsyncpa [#allocation4], 0
    %s11 = scalar_lea.sflag [#allocation4], 1
    %12 = vsyncpa %s11, 0
    loop: start=0, step=1, limit=5
    $region2: #{tpu_custom_call.1} parent=1 // loop_pre_header
      _
    $region3: #{tpu_custom_call.1} parent=1 // loop_header
      %s14 = sphi 0, %s18
      %p15 = scmp.ge.s32.totalorder %s14, 5
      %s24 = sphi 0, %s26
      %s27 = sphi 0, %s24
      %s28 = sphi 0, %s27
      %s44 = sphi 0, %s28
      %s48 = sphi 0, %s48
      %s50 = sphi 0, %s48
      %s51 = sphi 0, %s50
      %s65 = sphi 0, %s51
      %s71 = sphi 0, %s73
      %s74 = sphi 0, %s71
      %s75 = sphi 0, %s74
      %s91 = sphi 0, %s75
    $region4: #{tpu_custom_call.1} parent=1 // loop_header_branch
      %17 = sbr.rel (%p15) target = $region8
    $region5: #{tpu_custom_call.1} parent=1 // loop_body
      %s19 = ssub.s32 %s14, 1
      %s20 = ssub.s32 %s14, 2
      %s21 = sadd.s32 %s14, 1
      %s22 = ssub.s32 %s14, %s21
      %p23 = scmp.eq.s32.totalorder %s22, 0
      %s25 = sadd.s32 %s24, 1
      %s26 = scalar_select %p23, %s24, %s25
      %p29 = pneg %p23
      %p30 = scmp.eq.s32.totalorder %s14, 2
      %p31 = por %p29, %p30
      %p32 = scmp.ne.s32.totalorder %s24, %s27
      %p33 = scmp.eq.s32.totalorder %s14, 0
      %p34 = por %p32, %p33
      %p35 = scmp.ne.s32.totalorder %s24, %s27
      %p36 = scmp.eq.s32.totalorder %s19, 2
      %p37 = por %p35, %p36
      %p38 = scmp.ne.s32.totalorder %s27, %s28
      %p39 = scmp.eq.s32.totalorder %s19, 0
      %p40 = por %p38, %p39
      %p41 = scmp.ne.s32.totalorder %s27, %s28
      %p42 = scmp.eq.s32.totalorder %s20, 2
      %p43 = por %p41, %p42
      %p45 = scmp.ne.s32.totalorder %s28, %s44
      %p46 = scmp.eq.s32.totalorder %s20, 0
      %p47 = por %p45, %p46
      %s49 = sadd.s32 %s48, 1
      %p52 = scmp.eq.s32.totalorder %s14, 2
      %p53 = scmp.ne.s32.totalorder %s48, %s50
      %p54 = scmp.eq.s32.totalorder %s14, 0
      %p55 = por %p53, %p54
      %p56 = scmp.ne.s32.totalorder %s48, %s50
      %p57 = scmp.eq.s32.totalorder %s19, 2
      %p58 = por %p56, %p57
      %p59 = scmp.ne.s32.totalorder %s50, %s51
      %p60 = scmp.eq.s32.totalorder %s19, 0
      %p61 = por %p59, %p60
      %p62 = scmp.ne.s32.totalorder %s50, %s51
      %p63 = scmp.eq.s32.totalorder %s20, 2
      %p64 = por %p62, %p63
      %p66 = scmp.ne.s32.totalorder %s51, %s65
      %p67 = scmp.eq.s32.totalorder %s20, 0
      %p68 = por %p66, %p67
      %s69 = ssub.s32 %s14, %s21
      %p70 = scmp.eq.s32.totalorder %s69, 0
      %s72 = sadd.s32 %s71, 1
      %s73 = scalar_select %p70, %s71, %s72
      %p76 = pneg %p70
      %p77 = scmp.eq.s32.totalorder %s14, 2
      %p78 = por %p76, %p77
      %p79 = scmp.ne.s32.totalorder %s71, %s74
      %p80 = scmp.eq.s32.totalorder %s14, 0
      %p81 = por %p79, %p80
      %p82 = scmp.ne.s32.totalorder %s71, %s74
      %p83 = scmp.eq.s32.totalorder %s19, 2
      %p84 = por %p82, %p83
      %p85 = scmp.ne.s32.totalorder %s74, %s75
      %p86 = scmp.eq.s32.totalorder %s19, 0
      %p87 = por %p85, %p86
      %p88 = scmp.ne.s32.totalorder %s74, %s75
      %p89 = scmp.eq.s32.totalorder %s20, 2
      %p90 = por %p88, %p89
      %p92 = scmp.ne.s32.totalorder %s75, %s91
      %p93 = scmp.eq.s32.totalorder %s20, 0
      %p94 = por %p92, %p93
      %p95 = scmp.le.s32.totalorder 1, %s14
      %p96 = scmp.lt.s32.totalorder %s14, 4
      %p97 = pnand %p95, %p96
      %p98 = pneg %p97
      // Predicated region
      $region9: #{tpu_custom_call.1} parent=5 // pred_check
        _
      $region10: #{tpu_custom_call.1} parent=5 // pred_check_branch
        %100 = sbr.rel (%p97) target = $region12
      $region11: #{tpu_custom_call.1} parent=5 // pred_region
        %s101 = ssub.s32 %s14, 1
        // Predicated region
        $region13: #{tpu_custom_call.1} parent=11 // pred_check
          %p102 = pneg %p61
        $region14: #{tpu_custom_call.1} parent=11 // pred_check_branch
          %104 = sbr.rel (%p102) target = $region16
        $region15: #{tpu_custom_call.1} parent=11 // pred_region
          _
        $region16: #{tpu_custom_call.1} parent=11 // pred_fallthru
          _
      $region12: #{tpu_custom_call.1} parent=5 // pred_fallthru
        _
      %p105 = scmp.lt.s32.totalorder %s14, 3
      // Predicated region
      $region17: #{tpu_custom_call.1} parent=5 // pred_check
        %p106 = pneg %p105
      $region18: #{tpu_custom_call.1} parent=5 // pred_check_branch
        %108 = sbr.rel (%p106) target = $region20
      $region19: #{tpu_custom_call.1} parent=5 // pred_region
        // Predicated region
        $region21: #{tpu_custom_call.1} parent=19 // pred_check
          %p109 = pneg %p34
        $region22: #{tpu_custom_call.1} parent=19 // pred_check_branch
          %111 = sbr.rel (%p109) target = $region24
        $region23: #{tpu_custom_call.1} parent=19 // pred_region
          %s112 = sand.u32 %s24, 1
          %s113 = scalar_lea.sflag [#allocation3], %s112
          %s114 = sand.u32 %s24, 1
          %s115 = smul.addr %s114, 16
          %s116 = scalar_lea.vmem [#allocation2], %s115
          %s117 = smul.u32 2, %s14
          %s118 = ssub.s32 5, %s117
          %p119 = scmp.lt.s32.totalorder %s118, 2
          %s120 = scalar_select %p119, %s118, 2
          %s121 = smul.u32 128, %s120
          %s123 = ssub.s32 256, %s121
          %124 = vsyncadd %s113, %s123
          %p125 = scmp.ne.s32.totalorder 0, %s121
          %s126 = smul.addr %s117, 128
          %s127 = scalar_lea.hbm %s0, %s126
          %s128 = smul.u32 8, %s120
          %s129 = sshll.u32 %s116, 4
          %s130 = int_to_ptr.vmem [resolvable:$true] %s129
          %s131 = sshll.u32 %s128, 4
          %135 = dma.hbm_to_vmem [thread:$0]  (%p125), %s127, %s131, %s130, %s113, 128, 128, 8
        $region24: #{tpu_custom_call.1} parent=19 // pred_fallthru
          _
      $region20: #{tpu_custom_call.1} parent=5 // pred_fallthru
        _
      %p136 = scmp.le.s32.totalorder 1, %s14
      %p137 = scmp.lt.s32.totalorder %s14, 4
      %p138 = pnand %p136, %p137
      %p139 = pneg %p138
      // Predicated region
      $region25: #{tpu_custom_call.1} parent=5 // pred_check
        _
      $region26: #{tpu_custom_call.1} parent=5 // pred_check_branch
        %141 = sbr.rel (%p138) target = $region28
      $region27: #{tpu_custom_call.1} parent=5 // pred_region
        %s142 = ssub.s32 %s14, 1
        %s143 = sand.u32 %s27, 1
        %s144 = scalar_lea.sflag [#allocation3], %s143
        %s145 = sand.u32 %s27, 1
        %s146 = smul.addr %s145, 16
        %s147 = scalar_lea.vmem [#allocation2], %s146
        // Predicated region
        $region29: #{tpu_custom_call.1} parent=27 // pred_check
          %p148 = pneg %p40
        $region30: #{tpu_custom_call.1} parent=27 // pred_check_branch
          %150 = sbr.rel (%p148) target = $region32
        $region31: #{tpu_custom_call.1} parent=27 // pred_region
          %151 = dma.done %s144, 256
        $region32: #{tpu_custom_call.1} parent=27 // pred_fallthru
          _
        %s152 = sand.u32 %s27, 1
        %s153 = scalar_lea.sflag [#allocation3], %s152
        %s154 = sand.u32 %s27, 1
        %s155 = smul.addr %s154, 16
        %s156 = scalar_lea.vmem [#allocation2], %s155
        %p157 = pneg %p40
        %p158 = pneg %p37
        %p159 = pneg %p61
        %p160 = pneg %p58
        %p161 = pneg %p87
        %p162 = pneg %p84
        %s163 = sand.u32 %s74, 1
        %s164 = scalar_lea.sflag [#allocation4], %s163
        %s165 = sand.u32 %s74, 1
        %s166 = smul.addr %s165, 16
        %s167 = scalar_lea.vmem [#allocation5], %s166
        %s168 = smul.u32 2, %s19
        %s169 = ssub.s32 5, %s168
        %p170 = scmp.lt.s32.totalorder %s169, 2
        %s171 = scalar_select %p170, %s169, 2
        %s172 = smul.u32 128, %s171
        %s173 = smul.u32 2, %s19
        %s174 = ssub.s32 5, %s173
        %p175 = scmp.lt.s32.totalorder %s174, 2
        %s176 = scalar_select %p175, %s174, 2
        %s177 = smul.u32 128, %s176
        %v178 = vld [vmem:[%s147] sm:$0xff]
        %v179 = vld [vmem:[%s147 + $0x8] sm:$0xff]
        %v180 = vmul.f32 %v178, %v178
        %v181 = vmul.f32 %v179, %v179
        %182 = vadd.xlane.f32.xlu0 %v180
        %v183 = vpop.xlane.xlu0 %182
        %184 = vadd.xlane.f32.xlu0 %v181
        %v185 = vpop.xlane.xlu0 %184
        %v186 = vmul.f32 %v183, 0.0078125
        %v187 = vmul.f32 %v185, 0.0078125
        %v188 = vadd.f32 %v186, 1e-06
        %v189 = vadd.f32 %v187, 1e-06
        %v190 = vrsqrt.pop %v188
        %v191 = vrsqrt.pop %v189
        %v192 = vmul.f32 %v178, %v190
        %v193 = vmul.f32 %v179, %v191
        %v194 = vld [vmem:[%s1] sm:$0x1]
        %v196 = vlaneseq
        %v197 = vshrl.u32 %v196, 7
        %v198 = vsub.s32 0, %v197
        %v199 = vrot.slane %v194, %v198
        %v201 = vmul.f32 %v192, %v199
        %v202 = vmul.f32 %v193, %v199
        %203 = vst [vmem:[%s167] sm:$0xff] %v201
        %204 = vst [vmem:[%s167 + $0x8] sm:$0xff] %v202
        %s205 = sand.u32 %s74, 1
        %s206 = scalar_lea.sflag [#allocation4], %s205
        %s207 = sand.u32 %s74, 1
        %s208 = smul.addr %s207, 16
        %s209 = scalar_lea.vmem [#allocation5], %s208
        // Predicated region
        $region33: #{tpu_custom_call.1} parent=27 // pred_check
          %p210 = pneg %p84
        $region34: #{tpu_custom_call.1} parent=27 // pred_check_branch
          %212 = sbr.rel (%p210) target = $region36
        $region35: #{tpu_custom_call.1} parent=27 // pred_region
          %s213 = smul.u32 2, %s19
          %s214 = ssub.s32 5, %s213
          %p215 = scmp.lt.s32.totalorder %s214, 2
          %s216 = scalar_select %p215, %s214, 2
          %s217 = smul.u32 128, %s216
          %s219 = ssub.s32 256, %s217
          %220 = vsyncadd %s206, %s219
          %p221 = scmp.ne.s32.totalorder 0, %s217
          %s222 = smul.addr %s213, 128
          %s223 = scalar_lea.hbm %s2, %s222
          %s224 = smul.u32 8, %s216
          %s225 = sshll.u32 %s209, 4
          %s226 = int_to_ptr.vmem [resolvable:$true] %s225
          %s227 = sshll.u32 %s224, 4
          %231 = dma.vmem_to_hbm [thread:$0]  (%p221), %s226, %s227, %s223, %s206, 128, 128, 8
        $region36: #{tpu_custom_call.1} parent=27 // pred_fallthru
          _
      $region28: #{tpu_custom_call.1} parent=5 // pred_fallthru
        _
      %p232 = scmp.le.s32.totalorder 2, %s14
      // Predicated region
      $region37: #{tpu_custom_call.1} parent=5 // pred_check
        %p233 = pneg %p232
      $region38: #{tpu_custom_call.1} parent=5 // pred_check_branch
        %235 = sbr.rel (%p233) target = $region40
      $region39: #{tpu_custom_call.1} parent=5 // pred_region
        %s236 = ssub.s32 %s14, 2
        // Predicated region
        $region41: #{tpu_custom_call.1} parent=39 // pred_check
          %p237 = pneg %p90
        $region42: #{tpu_custom_call.1} parent=39 // pred_check_branch
          %239 = sbr.rel (%p237) target = $region44
        $region43: #{tpu_custom_call.1} parent=39 // pred_region
          %s240 = sand.u32 %s75, 1
          %s241 = scalar_lea.sflag [#allocation4], %s240
          %s242 = sand.u32 %s75, 1
          %s243 = smul.addr %s242, 16
          %s244 = scalar_lea.vmem [#allocation5], %s243
          %245 = dma.done %s241, 256
        $region44: #{tpu_custom_call.1} parent=39 // pred_fallthru
          _
      $region40: #{tpu_custom_call.1} parent=5 // pred_fallthru
        _
    $region6: #{tpu_custom_call.1} parent=1 // loop_footer
      %s18 = sadd.s32 1, %s14
    $region7: #{tpu_custom_call.1} parent=1 // loop_footer_branch
      %13 = sbr.rel target = $region3
    $region8: #{tpu_custom_call.1} parent=1 // loop_exit
      _
    %246 = vsyncpa [#allocation3], 1
    %s247 = scalar_lea.sflag [#allocation3], 1
    %248 = vsyncpa %s247, 1
    %249 = vsyncpa [#allocation4], 1
    %s250 = scalar_lea.sflag [#allocation4], 1
    %251 = vsyncpa %s250, 1

</llo_original>
